<compile_context>
chip_gen: v7x
topology: tpu7x:2x2x1
jax: 0.10.0
libtpu: 0.0.40
codegen_flags: <defaults>
</compile_context>

<pallas_src>
import math

import jax
import jax.numpy as jnp
from jax.experimental import pallas as pl
from jax.experimental.pallas import tpu as pltpu


def _scale_kernel(x_ref, z_ref, out_ref):
    # Hot path: one VPU multiply per vreg; the (1, width) z_scale row
    # broadcasts over the tile's rows.  Lane-dense output -> unmasked stores.
    out_ref[...] = x_ref[...] * z_ref[...]


# dtype itemsize -> sublane packing (rows per vreg sublane group)
_SUBLANE = {4: 8, 2: 16, 1: 32}
_MiB = 1024 * 1024


def _generation_params():
    """(target_tile_bytes, tile_budget_bytes, vmem_limit_bytes), per TPU generation."""
    vmem_cap = None
    try:
        info = pltpu.get_tpu_info()
        vmem_cap = getattr(info, "vmem_capacity_bytes", None)
    except Exception:
        vmem_cap = None
    if vmem_cap is not None and vmem_cap <= 80 * _MiB:
        # v7x-like: 64 MiB/TC VMEM, ~3.2 TB/s HBM -> per-step overhead is ~2.3x
        # more expensive than v6e, so push bigger tiles but keep headroom under
        # the smaller physical VMEM.
        return 6 * _MiB, 36 * _MiB, 40 * _MiB
    if vmem_cap is not None:
        # v5e / v6e: 128 MiB physical VMEM -> roomy budget, multi-MiB tiles.
        return 4 * _MiB, 64 * _MiB, 96 * _MiB
    # Unknown backend (e.g. interpret mode): conservative defaults.
    return 4 * _MiB, 32 * _MiB, 48 * _MiB


def _pick_tile_rows(rows, row_bytes, sublane, target_tile_bytes, tile_budget_bytes):
    """Byte-targeted row-tile size for a pure streaming elementwise op."""
    total_bytes = rows * row_bytes
    # Tiny problems: a single full-extent block (grid/pipe overhead would dominate).
    if total_bytes <= 2 * _MiB or rows <= 2 * sublane:
        return rows

    # Double-buffered footprint ~= 2 buffers * (x tile + out tile).
    max_rows = tile_budget_bytes // (4 * row_bytes)
    max_rows = max(sublane, (max_rows // sublane) * sublane)

    target_rows = max(sublane, target_tile_bytes // row_bytes)

    # Guarantee >= 4 grid steps: restores read/compute/write overlap and gives
    # the v7x megacore 'parallel' axis work on both TensorCores.
    min_steps = 4
    cap_rows = max(sublane, -(-rows // min_steps))

    tile = min(target_rows, max_rows, cap_rows, rows)
    tile = max(sublane, (tile // sublane) * sublane)

    # Within ~25% below the target, prefer a tile that (a) divides rows (no
    # masked ragged edge block) and (b) gives an even step count (v7x megacore).
    def _score(t):
        steps = -(-rows // t)
        return (rows % t == 0, steps % 2 == 0)

    best, best_score = tile, _score(tile)
    lo = max(sublane, (int(tile * 0.75) // sublane) * sublane)
    cand = tile - sublane
    while cand >= lo and best_score != (True, True):
        s = _score(cand)
        if s > best_score:
            best, best_score = cand, s
        cand -= sublane
    return best


def _lane_fuse_factor(rows, width):
    """Consecutive rows to fuse per kernel row so the last dim is a multiple of 128."""
    if width % 128 == 0:
        return 1
    k = 128 // math.gcd(width, 128)
    if k > 1 and rows % k == 0:
        return k
    return 1  # fall back: still correct, just masked partial stores on edge lanes


def slim_layer(x, alpha, *, kl_mult=1.0, mask_thresh=0.0, training=True,
               masking=False, tile_rows=None):
    """Returns (x * z_scale, kld) matching SlimLayer.forward.

    masking=True reproduces the `x * hard_mask` branch (no KLD -> returns None).
    """
    B, D = x.shape
    alpha_f32 = alpha.reshape(D).astype(jnp.float32)

    if masking:
        # forward(): return x * get_mask_hard(mask_thresh)   (no kld set)
        z_row = (jnp.abs(alpha_f32) > mask_thresh).astype(x.dtype)
        kld = None
    else:
        z = alpha_f32
        if not training:
            # eval path: z_scale *= hard mask (|alpha| > mask_thresh)
            z = z * (jnp.abs(alpha_f32) > mask_thresh).astype(jnp.float32)
        # NOTE: scale is applied in x.dtype; for bf16 activations this differs
        # from PyTorch's f32 promotion by at most one rounding step.
        z_row = z.astype(x.dtype)
        # Closed-form KL: O(D), depends only on alpha -> hoisted out of the kernel.
        kld = 0.5 * float(kl_mult) * jnp.sum(
            jnp.log(1.0 + alpha_f32 * alpha_f32 * 8000.0))

    # Lane-dense view: fuse k consecutive batch rows per kernel row so the
    # output's last dim is a multiple of 128 (unmasked full-lane stores).
    k = _lane_fuse_factor(B, D)
    rows, width = B // k, D * k
    x2 = x.reshape(rows, width)
    z2 = (jnp.tile(z_row, (k,)) if k > 1 else z_row).reshape(1, width)

    itemsize = x.dtype.itemsize
    sublane = _SUBLANE.get(itemsize, 8)
    target_tile_bytes, tile_budget, vmem_limit = _generation_params()
    if tile_rows is None:
        tile_rows = _pick_tile_rows(rows, width * itemsize, sublane,
                                    target_tile_bytes, tile_budget)
    tile_rows = min(int(tile_rows), rows)
    grid = (pl.cdiv(rows, tile_rows),)  # ragged tail (if any) handled by masked edge block

    out = pl.pallas_call(
        _scale_kernel,
        out_shape=jax.ShapeDtypeStruct((rows, width), x.dtype),
        grid=grid,
        in_specs=[
            pl.BlockSpec((tile_rows, width), lambda i: (i, 0)),   # x: streamed row tiles
            pl.BlockSpec((1, width), lambda i: (0, 0)),           # z_scale: resident
        ],
        out_specs=pl.BlockSpec((tile_rows, width), lambda i: (i, 0)),
        compiler_params=pltpu.CompilerParams(
            dimension_semantics=("parallel",),                    # megacore on v7x
            vmem_limit_bytes=vmem_limit,
        ),
        cost_estimate=pl.CostEstimate(
            flops=rows * width,
            transcendentals=0,
            bytes_accessed=2 * rows * width * itemsize + width * itemsize,
        ),
    )(x2, z2)
    return out.reshape(B, D), kld


if __name__ == "__main__":
    key = jax.random.PRNGKey(0)
    kx, ka, kx2, kx3 = jax.random.split(key, 4)

    # --- training path, D multiple of 128 -------------------------------------
    batch, dim = 16, 128
    x = jax.random.normal(kx, (batch, dim), dtype=jnp.float32)
    # SlimLayer.__init__ fills alpha with 1; perturb so the hard mask is non-trivial.
    alpha = jnp.ones((dim,), jnp.float32) + 0.1 * jax.random.normal(ka, (dim,), jnp.float32)

    out, kld = slim_layer(x, alpha, kl_mult=1.0, mask_thresh=0.0, training=True)
    out = jax.block_until_ready(out)
    kld = jax.block_until_ready(kld)

    ref_out = x * alpha.reshape(1, -1)
    ref_kld = 0.5 * 1.0 * jnp.sum(jnp.log(1.0 + alpha ** 2 * 8000.0))
    assert jnp.allclose(out, ref_out, atol=1e-5, rtol=1e-5)
    assert jnp.allclose(kld, ref_kld, atol=1e-3, rtol=1e-5)

    # --- eval path (hard mask) with explicit small tile AND a ragged edge -----
    batch_r = 20  # not a multiple of tile_rows=8 -> exercises masked edge block
    x_r = jax.random.normal(kx2, (batch_r, dim), dtype=jnp.float32)
    out_e, kld_e = slim_layer(x_r, alpha, kl_mult=1.0, mask_thresh=1.0,
                              training=False, tile_rows=8)
    out_e = jax.block_until_ready(out_e)
    z_ref = alpha * (jnp.abs(alpha) > 1.0).astype(jnp.float32)
    assert jnp.allclose(out_e, x_r * z_ref.reshape(1, -1), atol=1e-5, rtol=1e-5)
    assert jnp.allclose(kld_e, ref_kld, atol=1e-3, rtol=1e-5)

    # --- masking=True branch (x * hard_mask, no KLD) --------------------------
    out_m, kld_m = slim_layer(x, alpha, mask_thresh=1.0, masking=True)
    out_m = jax.block_until_ready(out_m)
    assert kld_m is None
    assert jnp.allclose(
        out_m, x * (jnp.abs(alpha) > 1.0).astype(jnp.float32).reshape(1, -1),
        atol=1e-5, rtol=1e-5)

    # --- bf16, D not a multiple of 128 -> lane-dense row fusion path ----------
    batch_b, dim_b = 24, 96      # fuse factor k = 128/gcd(96,128) = 4 -> width 384
    xb = jax.random.normal(kx3, (batch_b, dim_b), dtype=jnp.float32).astype(jnp.bfloat16)
    ab = jnp.ones((dim_b,), jnp.float32) + 0.1 * jax.random.normal(ka, (dim_b,), jnp.float32)
    out_b, kld_b = slim_layer(xb, ab, kl_mult=0.5, training=True)
    out_b = jax.block_until_ready(out_b)
    ref_b = (xb.astype(jnp.float32) * ab.reshape(1, -1)).astype(jnp.bfloat16)
    assert jnp.allclose(out_b.astype(jnp.float32), ref_b.astype(jnp.float32),
                        atol=2e-2, rtol=2e-2)
    ref_kld_b = 0.5 * 0.5 * jnp.sum(jnp.log(1.0 + ab ** 2 * 8000.0))
    assert jnp.allclose(kld_b, ref_kld_b, atol=1e-3, rtol=1e-5)

    print("KERNEL_OK")
</pallas_src>

<mosaic_0001>
module attributes {stable_mosaic.version = 11 : i64} {
  func.func @_scale_kernel(%arg0: i32, %arg1: memref<16x128xf32, #tpu.memory_space<vmem>>, %arg2: memref<1x128xf32, #tpu.memory_space<vmem>>, %arg3: memref<16x128xf32, #tpu.memory_space<vmem>>) attributes {dimension_semantics = [#tpu.dimension_semantics<parallel>], iteration_bounds = array<i64: 1>, scalar_prefetch = 0 : i64, scratch_operands = 0 : i64, tpu.core_type = #tpu.core_type<tc>, window_params = [{transform_indices = @transform_0, window_bounds = array<i64: 16, 128>}, {pipeline_mode = #tpu.pipeline_mode<synchronous>, transform_indices = @transform_1, window_bounds = array<i64: 1, 128>}, {transform_indices = @transform_2, window_bounds = array<i64: 16, 128>}]} {
    %c0 = arith.constant 0 : index
    %c0_0 = arith.constant 0 : index
    %0 = vector.load %arg1[%c0, %c0_0] : memref<16x128xf32, #tpu.memory_space<vmem>>, vector<16x128xf32>
    %c0_1 = arith.constant 0 : index
    %c0_2 = arith.constant 0 : index
    %1 = vector.load %arg2[%c0_1, %c0_2] : memref<1x128xf32, #tpu.memory_space<vmem>>, vector<1x128xf32>
    %2 = vector.broadcast %1 : vector<1x128xf32> to vector<16x128xf32>
    %3 = arith.mulf %0, %2 : vector<16x128xf32>
    %c0_3 = arith.constant 0 : index
    %c0_4 = arith.constant 0 : index
    %4 = vector.load %arg3[%c0_3, %c0_4] : memref<16x128xf32, #tpu.memory_space<vmem>>, vector<16x128xf32>
    tpu.vector_store %arg3[%c0_3, %c0_4], %3 {strides = array<i32>} : memref<16x128xf32, #tpu.memory_space<vmem>>, vector<16x128xf32>,
    return
  }
  func.func @transform_0(%arg0: i32) -> (i32, i32) {
    %c0_i32 = arith.constant 0 : i32
    %c0_i32_0 = arith.constant 0 : i32
    return %arg0, %c0_i32 : i32, i32
  }
  func.func @transform_1(%arg0: i32) -> (i32, i32) {
    %c0_i32 = arith.constant 0 : i32
    %c0_i32_0 = arith.constant 0 : i32
    %c0_i32_1 = arith.constant 0 : i32
    return %c0_i32, %c0_i32_0 : i32, i32
  }
  func.func @transform_2(%arg0: i32) -> (i32, i32) {
    %c0_i32 = arith.constant 0 : i32
    %c0_i32_0 = arith.constant 0 : i32
    return %arg0, %c0_i32 : i32, i32
  }
}

</mosaic_0001>

<llo_original>
// kernel: tpu_custom_call.1
$region0: #{tpu_custom_call.1}
  #allocation0 [shape = 'u32[]', space=smem, size = 0x4, offset = 0x4, fixed_abs, tag = 'smem constant byte address 0x4 - core index']
  #allocation1 [shape = 'u32[144,128]{1,0:T(1,128)}', space=vmem, size = 0x12000, scoped, tag = 'internal scratch']
  %s0 = inlined_call_operand.hbm [shape: f32[16,128], index: 0, kind: input, shape index: {}]
  %s1 = inlined_call_operand.vmem [shape: f32[1,128], index: 1, kind: input, shape index: {}]
  %s2 = inlined_call_operand.hbm [shape: f32[16,128], index: 2, kind: output, shape index: {}]
  %s3 = sld [smem:[#allocation0]]
  $region22: #{tpu_custom_call.1} parent=0
    _
  %s5 = ssub.s32 1, %s3
  %s6 = scalar_select 0, %s5, %s3
  $region1: #{tpu_custom_call.1} parent=0
    #allocation2 [shape = 'u8[8192]{0}', space=vmem, size = 0x2000, scoped, tag = 'input window, operand 0, single buffered']
    #allocation3 [shape = 's32[1]{0}', space=sflag, size = 0x4, scoped, tag = 'scoped memory for tpu_custom_call.1']
    #allocation4 [shape = 's32[1]{0}', space=sflag, size = 0x4, scoped, tag = 'scoped memory for tpu_custom_call.1']
    #allocation5 [shape = 'u8[8192]{0}', space=vmem, size = 0x2000, scoped, tag = 'output window, operand 0, single buffered']
    %7 = vsyncpa [#allocation3], 0
    %8 = vsyncpa [#allocation4], 0
    // Predicated region
    $region2: #{tpu_custom_call.1} parent=1 // pred_check
      _
    $region3: #{tpu_custom_call.1} parent=1 // pred_check_branch
      %10 = sbr.rel (0) target = $region5
    $region4: #{tpu_custom_call.1} parent=1 // pred_region
      %s12 = ssub.s32 256, 256
      %13 = vsyncadd [#allocation3], %s12
      %s14 = sshll.u32 [#allocation2], 4
      %s15 = int_to_ptr.vmem [resolvable:$true] %s14
      %20 = dma.hbm_to_vmem [thread:$0]  %s0, 256, %s15, [#allocation3], 128, 128, 8
    $region5: #{tpu_custom_call.1} parent=1 // pred_fallthru
      _
    // Predicated region
    $region6: #{tpu_custom_call.1} parent=1 // pred_check
      _
    $region7: #{tpu_custom_call.1} parent=1 // pred_check_branch
      %22 = sbr.rel (0) target = $region9
    $region8: #{tpu_custom_call.1} parent=1 // pred_region
      _
    $region9: #{tpu_custom_call.1} parent=1 // pred_fallthru
      _
    // Predicated region
    $region10: #{tpu_custom_call.1} parent=1 // pred_check
      _
    $region11: #{tpu_custom_call.1} parent=1 // pred_check_branch
      %24 = sbr.rel (0) target = $region13
    $region12: #{tpu_custom_call.1} parent=1 // pred_region
      %25 = dma.done [#allocation3], 256
    $region13: #{tpu_custom_call.1} parent=1 // pred_fallthru
      _
    %v26 = vld [vmem:[#allocation2] sm:$0xff]
    %v27 = vld [vmem:[#allocation2 + $0x8] sm:$0xff]
    %v28 = vld [vmem:[%s1] sm:$0x1]
    %v30 = vlaneseq
    %v31 = vshrl.u32 %v30, 7
    %v32 = vsub.s32 0, %v31
    %v33 = vrot.slane %v28, %v32
    %v35 = vmul.f32 %v26, %v33
    %v36 = vmul.f32 %v27, %v33
    %37 = vst [vmem:[#allocation5] sm:$0xff] %v35
    %38 = vst [vmem:[#allocation5 + $0x8] sm:$0xff] %v36
    // Predicated region
    $region14: #{tpu_custom_call.1} parent=1 // pred_check
      _
    $region15: #{tpu_custom_call.1} parent=1 // pred_check_branch
      %40 = sbr.rel (0) target = $region17
    $region16: #{tpu_custom_call.1} parent=1 // pred_region
      %s42 = ssub.s32 256, 256
      %43 = vsyncadd [#allocation4], %s42
      %s44 = sshll.u32 [#allocation5], 4
      %s45 = int_to_ptr.vmem [resolvable:$true] %s44
      %50 = dma.vmem_to_hbm [thread:$0]  %s45, 256, %s2, [#allocation4], 128, 128, 8
    $region17: #{tpu_custom_call.1} parent=1 // pred_fallthru
      _
    // Predicated region
    $region18: #{tpu_custom_call.1} parent=1 // pred_check
      _
    $region19: #{tpu_custom_call.1} parent=1 // pred_check_branch
      %52 = sbr.rel (0) target = $region21
    $region20: #{tpu_custom_call.1} parent=1 // pred_region
      %53 = dma.done [#allocation4], 256
    $region21: #{tpu_custom_call.1} parent=1 // pred_fallthru
      _
    %54 = vsyncpa [#allocation3], 1
    %55 = vsyncpa [#allocation4], 1

</llo_original>
